<compile_context>
chip_gen: v7x
topology: tpu7x:2x2x1
jax: 0.10.0
libtpu: 0.0.40
codegen_flags: <defaults>
</compile_context>

<pallas_src>
import functools

import jax
import jax.numpy as jnp
from jax.experimental import pallas as pl
from jax.experimental.pallas import tpu as pltpu


_CPARAMS = pltpu.CompilerParams(
    dimension_semantics=("parallel",),
    vmem_limit_bytes=32 * 1024 * 1024,
)


# ---------------------------------------------------------------------------
# Pallas kernels
# ---------------------------------------------------------------------------
def _res_block_kernel(x_ref, wa_ref, ba_ref, wb_ref, bb_ref, mask_ref, o_ref,
                      *, offs_a, offs_b, wt, m_out, cout, relu_out):
    """Fused residual block: conv1 + 1x1 skip -> ReLU -> conv2 + add (+ReLU).

    x_ref   : (1, L, Cin)        bf16  padded image, (H, W) flattened row-major
    wa_ref  : (Ta*Cin, 2*cout)   bf16  [conv1 | skip] taps stacked along K
    ba_ref  : (1, 2*cout)        f32
    wb_ref  : (9*cout, cout)     bf16  conv2 taps stacked along K
    bb_ref  : (1, cout)          f32
    mask_ref: (m_out, 1)         f32   1.0 for valid columns (x < wout)
    o_ref   : (1, m_out, cout)         output rows on the padded-width grid

    Everything between the two matmuls stays in VMEM/vregs; the per-block HBM
    traffic is exactly one input read and one output write.
    """
    xb = x_ref[0]                                              # (L, Cin) bf16

    # conv1 + skip: taps stacked along the contraction axis -> one MXU matmul.
    xsa = jnp.concatenate([xb[off:off + m_out] for off in offs_a], axis=-1)
    ta = jnp.dot(xsa, wa_ref[...], preferred_element_type=jnp.float32)
    ta = ta + ba_ref[...]

    mask = mask_ref[...]                                       # (m_out, 1)
    main = jnp.maximum(ta[:, :cout], 0.0) * mask               # ReLU branch
    skip = ta[:, cout:2 * cout]                                # residual (f32)

    # Rebuild the zero-padded intermediate image (1-pixel border) in VMEM:
    # placing the masked rows at flat offset wt+1 makes the top/left/right
    # borders land on zeros.
    zpad = jnp.zeros((wt + 1, cout), jnp.bfloat16)
    buf = jnp.concatenate([zpad, main.astype(jnp.bfloat16), zpad], axis=0)

    # conv2 (tap-stacked) + residual add in f32 (+ optional output ReLU).
    xsb = jnp.concatenate([buf[off:off + m_out] for off in offs_b], axis=-1)
    tb = jnp.dot(xsb, wb_ref[...], preferred_element_type=jnp.float32)
    tb = tb + bb_ref[...] + skip
    if relu_out:
        tb = jnp.maximum(tb, 0.0)
    o_ref[0] = tb.astype(o_ref.dtype)


def _conv_lstm_kernel(x_ref, w_ref, b_ref, c_ref, h_ref, c_out_ref, *,
                      offs, m_out, hid):
    """Fused ConvLSTM step: gate conv (one tap-stacked matmul) + nonlinearities.

    Gates are packed densely on 4*hid lanes, order (i, f, o, g).
    """
    xb = x_ref[0]                                              # (L, Cin) bf16
    xs = jnp.concatenate([xb[off:off + m_out] for off in offs], axis=-1)
    acc = jnp.dot(xs, w_ref[...], preferred_element_type=jnp.float32)
    acc = acc + b_ref[...]

    i = jax.nn.sigmoid(acc[:, 0 * hid:1 * hid])
    f = jax.nn.sigmoid(acc[:, 1 * hid:2 * hid])
    o = jax.nn.sigmoid(acc[:, 2 * hid:3 * hid])
    g = jnp.tanh(acc[:, 3 * hid:4 * hid])

    c = c_ref[0]
    c_next = f * c + i * g
    h_next = o * jnp.tanh(c_next)
    h_ref[0] = h_next.astype(h_ref.dtype)
    c_out_ref[0] = c_next


# ---------------------------------------------------------------------------
# Pallas wrappers
# ---------------------------------------------------------------------------
def _res_block_call(blk, xt, hout, wout, out_dtype, relu_out):
    """Run one fused residual block on a pre-padded tap image.

    xt : (B, Hp, Wt, Cin) bf16 with Wt == wout + 2 and enough bottom slack.
    Returns (B, hout, wout, cout).
    """
    B, Hp, Wt, Cin = xt.shape
    L = Hp * Wt
    m_out = hout * Wt
    cout = blk["cout"]
    if blk["taps_a"] == 4:                       # space-to-depth stride-2 conv
        offs_a = tuple(dy * Wt + dx for dy in range(2) for dx in range(2))
    else:                                        # plain 3x3 conv, pad=1
        offs_a = tuple(dy * Wt + dx for dy in range(3) for dx in range(3))
    offs_b = tuple(dy * Wt + dx for dy in range(3) for dx in range(3))
    assert Wt >= wout + 2, "need >= 2 slack columns for the fused conv2"
    assert m_out - 1 + max(offs_a) < L, "insufficient bottom padding"

    xf = xt.reshape(B, L, Cin)
    colmask = jnp.tile((jnp.arange(Wt) < wout).astype(jnp.float32),
                       hout).reshape(m_out, 1)

    flops = 2 * B * m_out * (len(offs_a) * Cin * 2 * cout + 9 * cout * cout)
    bytes_accessed = int(
        B * L * Cin * 2
        + B * m_out * cout * jnp.dtype(out_dtype).itemsize
        + 2 * (blk["wA"].size + blk["wB"].size) + 4 * m_out)

    out = pl.pallas_call(
        functools.partial(_res_block_kernel, offs_a=offs_a, offs_b=offs_b,
                          wt=Wt, m_out=m_out, cout=cout, relu_out=relu_out),
        out_shape=jax.ShapeDtypeStruct((B, m_out, cout), out_dtype),
        grid=(B,),
        in_specs=[
            pl.BlockSpec((1, L, Cin), lambda b: (b, 0, 0)),
            pl.BlockSpec(blk["wA"].shape, lambda b: (0, 0)),
            pl.BlockSpec(blk["bA"].shape, lambda b: (0, 0)),
            pl.BlockSpec(blk["wB"].shape, lambda b: (0, 0)),
            pl.BlockSpec(blk["bB"].shape, lambda b: (0, 0)),
            pl.BlockSpec((m_out, 1), lambda b: (0, 0)),
        ],
        out_specs=pl.BlockSpec((1, m_out, cout), lambda b: (b, 0, 0)),
        compiler_params=_CPARAMS,
        cost_estimate=pl.CostEstimate(flops=flops, transcendentals=0,
                                      bytes_accessed=bytes_accessed),
    )(xf, blk["wA"], blk["bA"], blk["wB"], blk["bB"], colmask)
    return out.reshape(B, hout, Wt, cout)[:, :, :wout, :]


def _conv_lstm_call(blk, xt, c):
    """Fused ConvLSTM step.  xt: padded [x, h] image (bf16), c: (B,H,W,hid) f32."""
    B, Hp, Wt, Cin = xt.shape
    hout, wout = c.shape[1], c.shape[2]
    hid = blk["hid"]
    L = Hp * Wt
    m_out = hout * Wt
    offs = tuple(dy * Wt + dx for dy in range(3) for dx in range(3))
    assert m_out - 1 + max(offs) < L, "insufficient bottom padding"

    xf = xt.reshape(B, L, Cin)
    cf = jnp.pad(c, ((0, 0), (0, 0), (0, Wt - wout), (0, 0))).reshape(
        B, m_out, hid)

    flops = 2 * B * m_out * 9 * Cin * 4 * hid
    transcendentals = 6 * B * m_out * hid
    bytes_accessed = int(B * L * Cin * 2 + 2 * blk["w"].size
                         + B * m_out * hid * (4 + 4 + 2))

    h_n, c_n = pl.pallas_call(
        functools.partial(_conv_lstm_kernel, offs=offs, m_out=m_out, hid=hid),
        out_shape=(jax.ShapeDtypeStruct((B, m_out, hid), jnp.bfloat16),
                   jax.ShapeDtypeStruct((B, m_out, hid), jnp.float32)),
        grid=(B,),
        in_specs=[
            pl.BlockSpec((1, L, Cin), lambda b: (b, 0, 0)),
            pl.BlockSpec(blk["w"].shape, lambda b: (0, 0)),
            pl.BlockSpec(blk["b"].shape, lambda b: (0, 0)),
            pl.BlockSpec((1, m_out, hid), lambda b: (b, 0, 0)),
        ],
        out_specs=(pl.BlockSpec((1, m_out, hid), lambda b: (b, 0, 0)),
                   pl.BlockSpec((1, m_out, hid), lambda b: (b, 0, 0))),
        compiler_params=_CPARAMS,
        cost_estimate=pl.CostEstimate(flops=flops,
                                      transcendentals=transcendentals,
                                      bytes_accessed=bytes_accessed),
    )(xf, blk["w"], blk["b"], cf)
    h_n = h_n.reshape(B, hout, Wt, hid)[:, :, :wout, :]
    c_n = c_n.reshape(B, hout, Wt, hid)[:, :, :wout, :]
    return h_n, c_n


# ---------------------------------------------------------------------------
# Weight preparation (fusion / layout / bf16 / K-stacking)
# ---------------------------------------------------------------------------
def _taps_weight_stacked(w_oihw):
    """(Cout, Cin, kh, kw) -> (kh*kw*Cin, Cout); rows ordered (dy, dx, cin)."""
    co, ci, kh, kw = w_oihw.shape
    return jnp.transpose(w_oihw, (2, 3, 1, 0)).reshape(kh * kw * ci, co)


def _s2d_weight_stacked(w_oihw):
    """3x3 stride-2 weight -> 2x2-tap weight over 2x2 space-to-depth phases.

    Returns (4*4*Cin, Cout); rows ordered (tap (ty,tx), phase (py,px), cin),
    matching the phase concatenation in encoder_block and the in-kernel
    tap-stacked concat.
    """
    co, ci, kh, kw = w_oihw.shape
    assert kh == 3 and kw == 3
    w2 = jnp.zeros((2, 2, 2, 2, ci, co), w_oihw.dtype)
    for dy in range(3):
        for dx in range(3):
            w2 = w2.at[dy // 2, dx // 2, dy % 2, dx % 2].set(
                jnp.transpose(w_oihw[:, :, dy, dx]))
    return w2.reshape(4 * 4 * ci, co)


def _prep_res_block(p, cout, stride2):
    """Fuse conv1 + 1x1 skip into one weight slab; stack conv2 taps along K."""
    skip3 = jnp.pad(p["skip"]["w"], ((0, 0), (0, 0), (1, 1), (1, 1)))
    wf = jnp.concatenate([p["conv1"]["w"], skip3], axis=0)    # (2*cout,cin,3,3)
    bf = jnp.concatenate([p["conv1"]["b"], p["skip"]["b"]])
    if stride2:
        wA = _s2d_weight_stacked(wf)
        taps_a = 4
    else:
        wA = _taps_weight_stacked(wf)
        taps_a = 9
    wB = _taps_weight_stacked(p["conv2"]["w"])                # (9*cout, cout)
    return {
        "wA": wA.astype(jnp.bfloat16),
        "bA": bf.reshape(1, -1).astype(jnp.float32),
        "wB": wB.astype(jnp.bfloat16),
        "bB": p["conv2"]["b"].reshape(1, -1).astype(jnp.float32),
        "cout": int(cout),
        "taps_a": taps_a,
    }


def prepare_params(params, in_ch, enc_layers_ch, rnn_ch):
    prep = {"enc": [], "rnn": [], "dec": []}
    for p, cout in zip(params["enc"], enc_layers_ch):
        prep["enc"].append(_prep_res_block(p, cout, stride2=True))

    for p in params["rnn"]:
        w = _taps_weight_stacked(p["w"]).astype(jnp.bfloat16)  # (9*Cin, 4*hid)
        b = p["b"].reshape(1, -1).astype(jnp.float32)
        prep["rnn"].append({"w": w, "b": b, "hid": int(rnn_ch)})

    if len(enc_layers_ch) > 1:
        dec_layers_ch = enc_layers_ch[::-1][1:]
    else:
        dec_layers_ch = []
    dec_layers_ch = dec_layers_ch + [in_ch]
    for p, cout in zip(params["dec"], dec_layers_ch):
        prep["dec"].append(_prep_res_block(p, cout, stride2=False))
    return prep


# ---------------------------------------------------------------------------
# Parameter construction (deterministic, synthetic, PyTorch OIHW layout)
# ---------------------------------------------------------------------------
def _init_conv(key, cout, cin, kh, kw, scale=0.1):
    kw_, kb_ = jax.random.split(key)
    w = jax.random.normal(kw_, (cout, cin, kh, kw), jnp.float32) * scale
    b = jax.random.normal(kb_, (cout,), jnp.float32) * scale
    return {"w": w, "b": b}


def init_params(key, in_ch, enc_layers_ch, rnn_ch, n_cells, rnn_kernel_size):
    keys = iter(jax.random.split(key, 64))
    params = {"enc": [], "rnn": [], "dec": []}

    cin = in_ch
    for cout in enc_layers_ch:
        params["enc"].append({
            "conv1": _init_conv(next(keys), cout, cin, 3, 3),
            "conv2": _init_conv(next(keys), cout, cout, 3, 3),
            "skip": _init_conv(next(keys), cout, cin, 1, 1),
        })
        cin = cout

    kh, kw = rnn_kernel_size
    for i in range(n_cells):
        in_size = enc_layers_ch[-1] if i == 0 else rnn_ch
        params["rnn"].append(
            _init_conv(next(keys), 4 * rnn_ch, in_size + rnn_ch, kh, kw))

    if len(enc_layers_ch) > 1:
        dec_layers_ch = enc_layers_ch[::-1][1:]
    else:
        dec_layers_ch = []
    dec_layers_ch = dec_layers_ch + [in_ch]
    cin = rnn_ch
    for cout in dec_layers_ch:
        params["dec"].append({
            "conv1": _init_conv(next(keys), cout, cin, 3, 3),
            "conv2": _init_conv(next(keys), cout, cout, 3, 3),
            "skip": _init_conv(next(keys), cout, cin, 1, 1),
        })
        cin = cout
    return params


# ---------------------------------------------------------------------------
# Blocks / model forward (NHWC internally, bf16 activations, f32 LSTM c state)
# ---------------------------------------------------------------------------
def encoder_block(blk, x):
    x = x.astype(jnp.bfloat16)
    B, H, W, C = x.shape
    assert H % 2 == 0 and W % 2 == 0
    # pad=1 image plus slack; 2x2 space-to-depth turns the stride-2 3x3 conv
    # (and the 1x1 stride-2 skip) into a stride-1 2x2-tap conv.
    xp = jnp.pad(x, ((0, 0), (1, 3), (1, 3), (0, 0)))
    xt = jnp.concatenate(
        [xp[:, py::2, px::2, :] for py in (0, 1) for px in (0, 1)], axis=-1)
    return _res_block_call(blk, xt, H // 2, W // 2, jnp.bfloat16,
                           relu_out=True)


def decoder_block(blk, x, final):
    x = x.astype(jnp.bfloat16)
    xu = jnp.repeat(jnp.repeat(x, 2, axis=1), 2, axis=2)  # nearest 2x upsample
    B, H, W, C = xu.shape
    xt = jnp.pad(xu, ((0, 0), (1, 2), (1, 1), (0, 0)))
    out_dtype = jnp.float32 if final else jnp.bfloat16
    return _res_block_call(blk, xt, H, W, out_dtype, relu_out=not final)


def encoder(prep, x):
    for p in prep["enc"]:
        x = encoder_block(p, x)
    return x


def decoder(prep, x):
    n = len(prep["dec"])
    for i, p in enumerate(prep["dec"]):
        x = decoder_block(p, x, final=(i == n - 1))
    return x


def conv_lstm_cell(blk, x, state):
    h, c = state
    comb = jnp.concatenate(
        [x.astype(jnp.bfloat16), h.astype(jnp.bfloat16)], axis=-1)
    xt = jnp.pad(comb, ((0, 0), (1, 2), (1, 1), (0, 0)))
    return _conv_lstm_call(blk, xt, c)


def init_state_hm(n_cells, rnn_ch, embeddings):
    B, _, He, We, _ = embeddings.shape
    h0 = jnp.zeros((B, He, We, rnn_ch), jnp.bfloat16)
    c0 = jnp.zeros((B, He, We, rnn_ch), jnp.float32)
    return [(h0, c0) for _ in range(n_cells)]


def state_space_heatmaps_forward(prep, x_nchw, *, n_seeds, n_cells, rnn_ch,
                                 residual_step=True, decoder_fixed_input=True):
    """x_nchw: (B, n_seqs, C, H, W)  ->  (B, n_seqs - n_seeds, C, H, W)."""
    b_size, n_seqs, n_joints, height, width = x_nchw.shape
    x = jnp.transpose(x_nchw, (0, 1, 3, 4, 2))          # (B, T, H, W, C)

    # Batched encoder over all seed frames.
    seeds = x[:, :n_seeds].reshape(b_size * n_seeds, height, width, n_joints)
    emb = encoder(prep, seeds)
    He, We, Ce = emb.shape[1], emb.shape[2], emb.shape[3]
    embeddings = emb.reshape(b_size, n_seeds, He, We, Ce)

    states = init_state_hm(n_cells, rnn_ch, embeddings)

    rnn_input = embeddings[:, 0]
    for i in range(n_seeds):
        rnn_input = embeddings[:, i]
        for j in range(n_cells):
            states[j] = conv_lstm_cell(prep["rnn"][j], rnn_input, states[j])
            rnn_input = states[j][0]

    outs = []
    dec_out = decoder(prep, rnn_input)
    if residual_step:
        outs.append(dec_out + x[:, n_seeds - 1])
    else:
        outs.append(dec_out)

    for _ in range(n_seqs - n_seeds - 1):
        if decoder_fixed_input:
            rnn_input = jnp.zeros_like(embeddings[:, 0])
        for j in range(n_cells):
            states[j] = conv_lstm_cell(prep["rnn"][j], rnn_input, states[j])
            rnn_input = states[j][0]
        dec_out = decoder(prep, rnn_input)
        if residual_step:
            outs.append(dec_out + outs[-1])
        else:
            outs.append(dec_out)

    out = jnp.stack(outs, axis=1)                 # (B, T_out, H, W, C)
    return jnp.transpose(out, (0, 1, 4, 2, 3))    # back to NCHW


# ---------------------------------------------------------------------------
# Numerical self-check of the fused kernels vs XLA convolutions
# ---------------------------------------------------------------------------
def _conv_ref(x, w, b, stride, padding):
    out = jax.lax.conv_general_dilated(
        x, jnp.transpose(w, (2, 3, 1, 0)),
        window_strides=(stride, stride),
        padding=[(padding, padding), (padding, padding)],
        dimension_numbers=("NHWC", "HWIO", "NHWC"))
    return out + b


def _self_check(params, prep, key):
    kx, kd, kh_, kc_ = jax.random.split(key, 4)

    # Encoder residual block (stride-2 conv1 + 1x1 stride-2 skip).
    in_ch = params["enc"][0]["conv1"]["w"].shape[1]
    x = jax.random.normal(kx, (2, 16, 16, in_ch), jnp.float32)
    p = params["enc"][0]
    a = jax.nn.relu(_conv_ref(x, p["conv1"]["w"], p["conv1"]["b"], 2, 1))
    y = _conv_ref(a, p["conv2"]["w"], p["conv2"]["b"], 1, 1)
    s = _conv_ref(x, p["skip"]["w"], p["skip"]["b"], 2, 0)
    ref = jax.nn.relu(y + s)
    got = encoder_block(prep["enc"][0], x)
    assert float(jnp.max(jnp.abs(got - ref))) < 1e-1, "encoder block mismatch"

    # Decoder residual block (nearest upsample + residual block).
    pd = params["dec"][0]
    cin_d = pd["conv1"]["w"].shape[1]
    xd = jax.random.normal(kd, (2, 4, 4, cin_d), jnp.float32)
    xu = jnp.repeat(jnp.repeat(xd, 2, axis=1), 2, axis=2)
    a = jax.nn.relu(_conv_ref(xu, pd["conv1"]["w"], pd["conv1"]["b"], 1, 1))
    y = _conv_ref(a, pd["conv2"]["w"], pd["conv2"]["b"], 1, 1)
    s = _conv_ref(xu, pd["skip"]["w"], pd["skip"]["b"], 1, 0)
    ref_d = jax.nn.relu(y + s)
    got_d = decoder_block(prep["dec"][0], xd, final=False)
    assert float(jnp.max(jnp.abs(got_d - ref_d))) < 1e-1, "decoder block mismatch"

    # ConvLSTM cell.
    pr = params["rnn"][0]
    hid = prep["rnn"][0]["hid"]
    cin = pr["w"].shape[1] - hid
    xe = jax.random.normal(kh_, (2, 4, 4, cin), jnp.float32)
    h0 = jax.random.normal(kc_, (2, 4, 4, hid), jnp.float32) * 0.5
    c0 = jnp.zeros_like(h0) + 0.3
    g = _conv_ref(jnp.concatenate([xe, h0], -1), pr["w"], pr["b"], 1, 1)
    gi, gf, go, gg = jnp.split(g, 4, axis=-1)
    c_ref = jax.nn.sigmoid(gf) * c0 + jax.nn.sigmoid(gi) * jnp.tanh(gg)
    h_ref = jax.nn.sigmoid(go) * jnp.tanh(c_ref)
    h_got, c_got = conv_lstm_cell(prep["rnn"][0], xe, (h0, c0))
    assert float(jnp.max(jnp.abs(h_got - h_ref))) < 5e-2, "lstm h mismatch"
    assert float(jnp.max(jnp.abs(c_got - c_ref))) < 5e-2, "lstm c mismatch"


# ---------------------------------------------------------------------------
# Main
# ---------------------------------------------------------------------------
if __name__ == "__main__":
    # Small, self-consistent configuration (module defaults scaled down).
    IN_CH = 4
    ENC_LAYERS_CH = [8, 16]
    RNN_CH = 16
    N_CELLS = 1
    N_SEEDS = 2
    N_SEQS = 5
    B, H, W = 2, 16, 16

    key = jax.random.PRNGKey(0)
    k_params, k_check, k_x = jax.random.split(key, 3)
    params = init_params(k_params, IN_CH, ENC_LAYERS_CH, RNN_CH, N_CELLS,
                         (3, 3))
    prep = prepare_params(params, IN_CH, ENC_LAYERS_CH, RNN_CH)

    _self_check(params, prep, k_check)

    x = jax.random.normal(k_x, (B, N_SEQS, IN_CH, H, W), jnp.float32)

    # NOTE: prep is bound via functools.partial (a closure), NOT passed as a
    # traced jit argument, so its per-layer Python ints stay static.
    fwd = jax.jit(functools.partial(
        state_space_heatmaps_forward, prep,
        n_seeds=N_SEEDS, n_cells=N_CELLS, rnn_ch=RNN_CH,
        residual_step=True, decoder_fixed_input=True))
    out = fwd(x)
    out = jax.block_until_ready(out)

    expected = (B, N_SEQS - N_SEEDS, IN_CH, H, W)
    assert out.shape == expected, (out.shape, expected)
    assert bool(jnp.all(jnp.isfinite(out)))
    print("KERNEL_OK")
</pallas_src>

<mosaic_0001>
module attributes {stable_mosaic.version = 11 : i64} {
  func.func @_res_block_kernel(%arg0: i32, %arg1: memref<1x100x16xbf16, #tpu.memory_space<vmem>>, %arg2: memref<64x16xbf16, #tpu.memory_space<vmem>>, %arg3: memref<1x16xf32, #tpu.memory_space<vmem>>, %arg4: memref<72x8xbf16, #tpu.memory_space<vmem>>, %arg5: memref<1x8xf32, #tpu.memory_space<vmem>>, %arg6: memref<80x1xf32, #tpu.memory_space<vmem>>, %arg7: memref<1x80x8xbf16, #tpu.memory_space<vmem>>) attributes {dimension_semantics = [#tpu.dimension_semantics<parallel>], iteration_bounds = array<i64: 2>, scalar_prefetch = 0 : i64, scratch_operands = 0 : i64, tpu.core_type = #tpu.core_type<tc>, window_params = [{transform_indices = @transform_0, window_bounds = array<i64: 1, 100, 16>}, {pipeline_mode = #tpu.pipeline_mode<synchronous>, transform_indices = @transform_1, window_bounds = array<i64: 64, 16>}, {pipeline_mode = #tpu.pipeline_mode<synchronous>, transform_indices = @transform_2, window_bounds = array<i64: 1, 16>}, {pipeline_mode = #tpu.pipeline_mode<synchronous>, transform_indices = @transform_3, window_bounds = array<i64: 72, 8>}, {pipeline_mode = #tpu.pipeline_mode<synchronous>, transform_indices = @transform_4, window_bounds = array<i64: 1, 8>}, {pipeline_mode = #tpu.pipeline_mode<synchronous>, transform_indices = @transform_5, window_bounds = array<i64: 80, 1>}, {transform_indices = @transform_6, window_bounds = array<i64: 1, 80, 8>}]} {
    %c0 = arith.constant 0 : index
    %c0_0 = arith.constant 0 : index
    %c0_1 = arith.constant 0 : index
    %0 = vector.load %arg1[%c0, %c0_0, %c0_1] : memref<1x100x16xbf16, #tpu.memory_space<vmem>>, vector<1x100x16xbf16>
    %1 = vector.shape_cast %0 : vector<1x100x16xbf16> to vector<100x16xbf16>
    %2 = vector.extract_strided_slice %1 {offsets = [0, 0], sizes = [80, 16], strides = [1, 1]} : vector<100x16xbf16> to vector<80x16xbf16>
    %3 = vector.extract_strided_slice %1 {offsets = [1, 0], sizes = [80, 16], strides = [1, 1]} : vector<100x16xbf16> to vector<80x16xbf16>
    %4 = vector.extract_strided_slice %1 {offsets = [10, 0], sizes = [80, 16], strides = [1, 1]} : vector<100x16xbf16> to vector<80x16xbf16>
    %5 = vector.extract_strided_slice %1 {offsets = [11, 0], sizes = [80, 16], strides = [1, 1]} : vector<100x16xbf16> to vector<80x16xbf16>
    %6 = tpu.concatenate %2, %3, %4, %5 in 1 : vector<80x16xbf16>, vector<80x16xbf16>, vector<80x16xbf16>, vector<80x16xbf16> -> vector<80x64xbf16>
    %c0_2 = arith.constant 0 : index
    %c0_3 = arith.constant 0 : index
    %7 = vector.load %arg2[%c0_2, %c0_3] : memref<64x16xbf16, #tpu.memory_space<vmem>>, vector<64x16xbf16>
    %cst = arith.constant dense<0.000000e+00> : vector<80x16xf32>
    %8 = tpu.matmul %6, %7, %cst {dimension_numbers = #tpu.dot_dimension_numbers<[1], [0], [0], [1], [0, 0, 1, 1], [], []>} : vector<80x64xbf16>, vector<64x16xbf16>, vector<80x16xf32> -> vector<80x16xf32>
    %c0_4 = arith.constant 0 : index
    %c0_5 = arith.constant 0 : index
    %9 = vector.load %arg3[%c0_4, %c0_5] : memref<1x16xf32, #tpu.memory_space<vmem>>, vector<1x16xf32>
    %10 = vector.broadcast %9 : vector<1x16xf32> to vector<80x16xf32>
    %11 = arith.addf %8, %10 : vector<80x16xf32>
    %c0_6 = arith.constant 0 : index
    %c0_7 = arith.constant 0 : index
    %12 = vector.load %arg6[%c0_6, %c0_7] : memref<80x1xf32, #tpu.memory_space<vmem>>, vector<80x1xf32>
    %13 = vector.extract_strided_slice %11 {offsets = [0, 0], sizes = [80, 8], strides = [1, 1]} : vector<80x16xf32> to vector<80x8xf32>
    %cst_8 = arith.constant 0.000000e+00 : f32
    %14 = vector.broadcast %cst_8 : f32 to vector<80x8xf32>
    %15 = arith.maximumf %13, %14 : vector<80x8xf32>
    %16 = vector.broadcast %12 : vector<80x1xf32> to vector<80x8xf32>
    %17 = arith.mulf %15, %16 : vector<80x8xf32>
    %18 = vector.extract_strided_slice %11 {offsets = [0, 8], sizes = [80, 8], strides = [1, 1]} : vector<80x16xf32> to vector<80x8xf32>
    %cst_9 = arith.constant 0.000000e+00 : bf16
    %19 = vector.broadcast %cst_9 : bf16 to vector<11x8xbf16>
    %20 = arith.truncf %17 : vector<80x8xf32> to vector<80x8xbf16>
    %21 = tpu.concatenate %19, %20, %19 in 0 : vector<11x8xbf16>, vector<80x8xbf16>, vector<11x8xbf16> -> vector<102x8xbf16>
    %22 = vector.extract_strided_slice %21 {offsets = [0, 0], sizes = [80, 8], strides = [1, 1]} : vector<102x8xbf16> to vector<80x8xbf16>
    %23 = vector.extract_strided_slice %21 {offsets = [1, 0], sizes = [80, 8], strides = [1, 1]} : vector<102x8xbf16> to vector<80x8xbf16>
    %24 = vector.extract_strided_slice %21 {offsets = [2, 0], sizes = [80, 8], strides = [1, 1]} : vector<102x8xbf16> to vector<80x8xbf16>
    %25 = vector.extract_strided_slice %21 {offsets = [10, 0], sizes = [80, 8], strides = [1, 1]} : vector<102x8xbf16> to vector<80x8xbf16>
    %26 = vector.extract_strided_slice %21 {offsets = [11, 0], sizes = [80, 8], strides = [1, 1]} : vector<102x8xbf16> to vector<80x8xbf16>
    %27 = vector.extract_strided_slice %21 {offsets = [12, 0], sizes = [80, 8], strides = [1, 1]} : vector<102x8xbf16> to vector<80x8xbf16>
    %28 = vector.extract_strided_slice %21 {offsets = [20, 0], sizes = [80, 8], strides = [1, 1]} : vector<102x8xbf16> to vector<80x8xbf16>
    %29 = vector.extract_strided_slice %21 {offsets = [21, 0], sizes = [80, 8], strides = [1, 1]} : vector<102x8xbf16> to vector<80x8xbf16>
    %30 = vector.extract_strided_slice %21 {offsets = [22, 0], sizes = [80, 8], strides = [1, 1]} : vector<102x8xbf16> to vector<80x8xbf16>
    %31 = tpu.concatenate %22, %23, %24, %25, %26, %27, %28, %29, %30 in 1 : vector<80x8xbf16>, vector<80x8xbf16>, vector<80x8xbf16>, vector<80x8xbf16>, vector<80x8xbf16>, vector<80x8xbf16>, vector<80x8xbf16>, vector<80x8xbf16>, vector<80x8xbf16> -> vector<80x72xbf16>
    %c0_10 = arith.constant 0 : index
    %c0_11 = arith.constant 0 : index
    %32 = vector.load %arg4[%c0_10, %c0_11] : memref<72x8xbf16, #tpu.memory_space<vmem>>, vector<72x8xbf16>
    %cst_12 = arith.constant dense<0.000000e+00> : vector<80x8xf32>
    %33 = tpu.matmul %31, %32, %cst_12 {dimension_numbers = #tpu.dot_dimension_numbers<[1], [0], [0], [1], [0, 0, 1, 1], [], []>} : vector<80x72xbf16>, vector<72x8xbf16>, vector<80x8xf32> -> vector<80x8xf32>
    %c0_13 = arith.constant 0 : index
    %c0_14 = arith.constant 0 : index
    %34 = vector.load %arg5[%c0_13, %c0_14] : memref<1x8xf32, #tpu.memory_space<vmem>>, vector<1x8xf32>
    %35 = vector.broadcast %34 : vector<1x8xf32> to vector<80x8xf32>
    %36 = arith.addf %33, %35 : vector<80x8xf32>
    %37 = arith.addf %36, %18 : vector<80x8xf32>
    %cst_15 = arith.constant 0.000000e+00 : f32
    %38 = vector.broadcast %cst_15 : f32 to vector<80x8xf32>
    %39 = arith.maximumf %37, %38 : vector<80x8xf32>
    %40 = arith.truncf %39 : vector<80x8xf32> to vector<80x8xbf16>
    %c0_16 = arith.constant 0 : index
    %c0_17 = arith.constant 0 : index
    %c0_18 = arith.constant 0 : index
    %41 = vector.load %arg7[%c0_16, %c0_17, %c0_18] : memref<1x80x8xbf16, #tpu.memory_space<vmem>>, vector<1x80x8xbf16>
    %42 = vector.shape_cast %41 : vector<1x80x8xbf16> to vector<80x8xbf16>
    %43 = vector.shape_cast %40 : vector<80x8xbf16> to vector<1x80x8xbf16>
    tpu.vector_store %arg7[%c0_16, %c0_17, %c0_18], %43 {strides = array<i32>} : memref<1x80x8xbf16, #tpu.memory_space<vmem>>, vector<1x80x8xbf16>,
    return
  }
  func.func @transform_0(%arg0: i32) -> (i32, i32, i32) {
    %c0_i32 = arith.constant 0 : i32
    %c0_i32_0 = arith.constant 0 : i32
    %c0_i32_1 = arith.constant 0 : i32
    return %arg0, %c0_i32, %c0_i32_0 : i32, i32, i32
  }
  func.func @transform_1(%arg0: i32) -> (i32, i32) {
    %c0_i32 = arith.constant 0 : i32
    %c0_i32_0 = arith.constant 0 : i32
    %c0_i32_1 = arith.constant 0 : i32
    return %c0_i32, %c0_i32_0 : i32, i32
  }
  func.func @transform_2(%arg0: i32) -> (i32, i32) {
    %c0_i32 = arith.constant 0 : i32
    %c0_i32_0 = arith.constant 0 : i32
    %c0_i32_1 = arith.constant 0 : i32
    return %c0_i32, %c0_i32_0 : i32, i32
  }
  func.func @transform_3(%arg0: i32) -> (i32, i32) {
    %c0_i32 = arith.constant 0 : i32
    %c0_i32_0 = arith.constant 0 : i32
    %c0_i32_1 = arith.constant 0 : i32
    return %c0_i32, %c0_i32_0 : i32, i32
  }
  func.func @transform_4(%arg0: i32) -> (i32, i32) {
    %c0_i32 = arith.constant 0 : i32
    %c0_i32_0 = arith.constant 0 : i32
    %c0_i32_1 = arith.constant 0 : i32
    return %c0_i32, %c0_i32_0 : i32, i32
  }
  func.func @transform_5(%arg0: i32) -> (i32, i32) {
    %c0_i32 = arith.constant 0 : i32
    %c0_i32_0 = arith.constant 0 : i32
    %c0_i32_1 = arith.constant 0 : i32
    return %c0_i32, %c0_i32_0 : i32, i32
  }
  func.func @transform_6(%arg0: i32) -> (i32, i32, i32) {
    %c0_i32 = arith.constant 0 : i32
    %c0_i32_0 = arith.constant 0 : i32
    %c0_i32_1 = arith.constant 0 : i32
    return %arg0, %c0_i32, %c0_i32_0 : i32, i32, i32
  }
}

</mosaic_0001>

<llo_original>
// kernel: tpu_custom_call.1
$region0: #{tpu_custom_call.1}
  #allocation0 [shape = 'u32[]', space=smem, size = 0x4, offset = 0x4, fixed_abs, tag = 'smem constant byte address 0x4 - core index']
  #allocation1 [shape = 'u32[144,128]{1,0:T(1,128)}', space=vmem, size = 0x12000, scoped, tag = 'internal scratch']
  %s0 = inlined_call_operand.vmem [shape: bf16[2,100,16], index: 0, kind: input, shape index: {}]
  %s1 = inlined_call_operand.vmem [shape: bf16[64,16], index: 1, kind: input, shape index: {}]
  %s2 = inlined_call_operand.vmem [shape: f32[1,16], index: 2, kind: input, shape index: {}]
  %s3 = inlined_call_operand.vmem [shape: bf16[72,8], index: 3, kind: input, shape index: {}]
  %s4 = inlined_call_operand.vmem [shape: f32[1,8], index: 4, kind: input, shape index: {}]
  %s5 = inlined_call_operand.vmem [shape: f32[80,1], index: 5, kind: input, shape index: {}]
  %s6 = inlined_call_operand.vmem [shape: bf16[2,80,8], index: 6, kind: output, shape index: {}]
  %s7 = sld [smem:[#allocation0]]
  $region57: #{tpu_custom_call.1} parent=0
    _
  %s9 = ssub.s32 1, %s7
  %s10 = scalar_select 0, %s9, %s7
  loop: start=0, step=1, limit=4
  $region2: #{tpu_custom_call.1} parent=0 // loop_pre_header
    _
  $region3: #{tpu_custom_call.1} parent=0 // loop_header
    %s12 = sphi 0, %s16
    %p13 = scmp.ge.s32.totalorder %s12, 4
    %s22 = sphi 0, %s24
    %s25 = sphi 0, %s22
    %s26 = sphi 0, %s25
    %s42 = sphi 0, %s26
    %s46 = sphi 0, %s46
    %s48 = sphi 0, %s46
    %s49 = sphi 0, %s48
    %s63 = sphi 0, %s49
    %s67 = sphi 0, %s67
    %s69 = sphi 0, %s67
    %s70 = sphi 0, %s69
    %s84 = sphi 0, %s70
    %s88 = sphi 0, %s88
    %s90 = sphi 0, %s88
    %s91 = sphi 0, %s90
    %s105 = sphi 0, %s91
    %s109 = sphi 0, %s109
    %s111 = sphi 0, %s109
    %s112 = sphi 0, %s111
    %s126 = sphi 0, %s112
    %s130 = sphi 0, %s130
    %s132 = sphi 0, %s130
    %s133 = sphi 0, %s132
    %s147 = sphi 0, %s133
    %s153 = sphi 0, %s155
    %s156 = sphi 0, %s153
    %s157 = sphi 0, %s156
    %s173 = sphi 0, %s157
  $region4: #{tpu_custom_call.1} parent=0 // loop_header_branch
    %15 = sbr.rel (%p13) target = $region8
  $region5: #{tpu_custom_call.1} parent=0 // loop_body
    %s17 = ssub.s32 %s12, 1
    %s18 = ssub.s32 %s12, 2
    %s19 = sadd.s32 %s12, 1
    %s20 = ssub.s32 %s12, %s19
    %p21 = scmp.eq.s32.totalorder %s20, 0
    %s23 = sadd.s32 %s22, 1
    %s24 = scalar_select %p21, %s22, %s23
    %p27 = pneg %p21
    %p28 = scmp.eq.s32.totalorder %s12, 1
    %p29 = por %p27, %p28
    %p30 = scmp.ne.s32.totalorder %s22, %s25
    %p31 = scmp.eq.s32.totalorder %s12, 0
    %p32 = por %p30, %p31
    %p33 = scmp.ne.s32.totalorder %s22, %s25
    %p34 = scmp.eq.s32.totalorder %s17, 1
    %p35 = por %p33, %p34
    %p36 = scmp.ne.s32.totalorder %s25, %s26
    %p37 = scmp.eq.s32.totalorder %s17, 0
    %p38 = por %p36, %p37
    %p39 = scmp.ne.s32.totalorder %s25, %s26
    %p40 = scmp.eq.s32.totalorder %s18, 1
    %p41 = por %p39, %p40
    %p43 = scmp.ne.s32.totalorder %s26, %s42
    %p44 = scmp.eq.s32.totalorder %s18, 0
    %p45 = por %p43, %p44
    %s47 = sadd.s32 %s46, 1
    %p50 = scmp.eq.s32.totalorder %s12, 1
    %p51 = scmp.ne.s32.totalorder %s46, %s48
    %p52 = scmp.eq.s32.totalorder %s12, 0
    %p53 = por %p51, %p52
    %p54 = scmp.ne.s32.totalorder %s46, %s48
    %p55 = scmp.eq.s32.totalorder %s17, 1
    %p56 = por %p54, %p55
    %p57 = scmp.ne.s32.totalorder %s48, %s49
    %p58 = scmp.eq.s32.totalorder %s17, 0
    %p59 = por %p57, %p58
    %p60 = scmp.ne.s32.totalorder %s48, %s49
    %p61 = scmp.eq.s32.totalorder %s18, 1
    %p62 = por %p60, %p61
    %p64 = scmp.ne.s32.totalorder %s49, %s63
    %p65 = scmp.eq.s32.totalorder %s18, 0
    %p66 = por %p64, %p65
    %s68 = sadd.s32 %s67, 1
    %p71 = scmp.eq.s32.totalorder %s12, 1
    %p72 = scmp.ne.s32.totalorder %s67, %s69
    %p73 = scmp.eq.s32.totalorder %s12, 0
    %p74 = por %p72, %p73
    %p75 = scmp.ne.s32.totalorder %s67, %s69
    %p76 = scmp.eq.s32.totalorder %s17, 1
    %p77 = por %p75, %p76
    %p78 = scmp.ne.s32.totalorder %s69, %s70
    %p79 = scmp.eq.s32.totalorder %s17, 0
    %p80 = por %p78, %p79
    %p81 = scmp.ne.s32.totalorder %s69, %s70
    %p82 = scmp.eq.s32.totalorder %s18, 1
    %p83 = por %p81, %p82
    %p85 = scmp.ne.s32.totalorder %s70, %s84
    %p86 = scmp.eq.s32.totalorder %s18, 0
    %p87 = por %p85, %p86
    %s89 = sadd.s32 %s88, 1
    %p92 = scmp.eq.s32.totalorder %s12, 1
    %p93 = scmp.ne.s32.totalorder %s88, %s90
    %p94 = scmp.eq.s32.totalorder %s12, 0
    %p95 = por %p93, %p94
    %p96 = scmp.ne.s32.totalorder %s88, %s90
    %p97 = scmp.eq.s32.totalorder %s17, 1
    %p98 = por %p96, %p97
    %p99 = scmp.ne.s32.totalorder %s90, %s91
    %p100 = scmp.eq.s32.totalorder %s17, 0
    %p101 = por %p99, %p100
    %p102 = scmp.ne.s32.totalorder %s90, %s91
    %p103 = scmp.eq.s32.totalorder %s18, 1
    %p104 = por %p102, %p103
    %p106 = scmp.ne.s32.totalorder %s91, %s105
    %p107 = scmp.eq.s32.totalorder %s18, 0
    %p108 = por %p106, %p107
    %s110 = sadd.s32 %s109, 1
    %p113 = scmp.eq.s32.totalorder %s12, 1
    %p114 = scmp.ne.s32.totalorder %s109, %s111
    %p115 = scmp.eq.s32.totalorder %s12, 0
    %p116 = por %p114, %p115
    %p117 = scmp.ne.s32.totalorder %s109, %s111
    %p118 = scmp.eq.s32.totalorder %s17, 1
    %p119 = por %p117, %p118
    %p120 = scmp.ne.s32.totalorder %s111, %s112
    %p121 = scmp.eq.s32.totalorder %s17, 0
    %p122 = por %p120, %p121
    %p123 = scmp.ne.s32.totalorder %s111, %s112
    %p124 = scmp.eq.s32.totalorder %s18, 1
    %p125 = por %p123, %p124
    %p127 = scmp.ne.s32.totalorder %s112, %s126
    %p128 = scmp.eq.s32.totalorder %s18, 0
    %p129 = por %p127, %p128
    %s131 = sadd.s32 %s130, 1
    %p134 = scmp.eq.s32.totalorder %s12, 1
    %p135 = scmp.ne.s32.totalorder %s130, %s132
    %p136 = scmp.eq.s32.totalorder %s12, 0
    %p137 = por %p135, %p136
    %p138 = scmp.ne.s32.totalorder %s130, %s132
    %p139 = scmp.eq.s32.totalorder %s17, 1
    %p140 = por %p138, %p139
    %p141 = scmp.ne.s32.totalorder %s132, %s133
    %p142 = scmp.eq.s32.totalorder %s17, 0
    %p143 = por %p141, %p142
    %p144 = scmp.ne.s32.totalorder %s132, %s133
    %p145 = scmp.eq.s32.totalorder %s18, 1
    %p146 = por %p144, %p145
    %p148 = scmp.ne.s32.totalorder %s133, %s147
    %p149 = scmp.eq.s32.totalorder %s18, 0
    %p150 = por %p148, %p149
    %s151 = ssub.s32 %s12, %s19
    %p152 = scmp.eq.s32.totalorder %s151, 0
    %s154 = sadd.s32 %s153, 1
    %s155 = scalar_select %p152, %s153, %s154
    %p158 = pneg %p152
    %p159 = scmp.eq.s32.totalorder %s12, 1
    %p160 = por %p158, %p159
    %p161 = scmp.ne.s32.totalorder %s153, %s156
    %p162 = scmp.eq.s32.totalorder %s12, 0
    %p163 = por %p161, %p162
    %p164 = scmp.ne.s32.totalorder %s153, %s156
    %p165 = scmp.eq.s32.totalorder %s17, 1
    %p166 = por %p164, %p165
    %p167 = scmp.ne.s32.totalorder %s156, %s157
    %p168 = scmp.eq.s32.totalorder %s17, 0
    %p169 = por %p167, %p168
    %p170 = scmp.ne.s32.totalorder %s156, %s157
    %p171 = scmp.eq.s32.totalorder %s18, 1
    %p172 = por %p170, %p171
    %p174 = scmp.ne.s32.totalorder %s157, %s173
    %p175 = scmp.eq.s32.totalorder %s18, 0
    %p176 = por %p174, %p175
    %p177 = scmp.le.s32.totalorder 1, %s12
    %p178 = scmp.lt.s32.totalorder %s12, 3
    %p179 = pnand %p177, %p178
    %p180 = pneg %p179
    // Predicated region
    $region9: #{tpu_custom_call.1} parent=5 // pred_check
      _
    $region10: #{tpu_custom_call.1} parent=5 // pred_check_branch
      %182 = sbr.rel (%p179) target = $region12
    $region11: #{tpu_custom_call.1} parent=5 // pred_region
      %s183 = ssub.s32 %s12, 1
      // Predicated region
      $region13: #{tpu_custom_call.1} parent=11 // pred_check
        %p184 = pneg %p59
      $region14: #{tpu_custom_call.1} parent=11 // pred_check_branch
        %186 = sbr.rel (%p184) target = $region16
      $region15: #{tpu_custom_call.1} parent=11 // pred_region
        _
      $region16: #{tpu_custom_call.1} parent=11 // pred_fallthru
        _
      // Predicated region
      $region17: #{tpu_custom_call.1} parent=11 // pred_check
        %p187 = pneg %p80
      $region18: #{tpu_custom_call.1} parent=11 // pred_check_branch
        %189 = sbr.rel (%p187) target = $region20
      $region19: #{tpu_custom_call.1} parent=11 // pred_region
        _
      $region20: #{tpu_custom_call.1} parent=11 // pred_fallthru
        _
      // Predicated region
      $region21: #{tpu_custom_call.1} parent=11 // pred_check
        %p190 = pneg %p101
      $region22: #{tpu_custom_call.1} parent=11 // pred_check_branch
        %192 = sbr.rel (%p190) target = $region24
      $region23: #{tpu_custom_call.1} parent=11 // pred_region
        _
      $region24: #{tpu_custom_call.1} parent=11 // pred_fallthru
        _
      // Predicated region
      $region25: #{tpu_custom_call.1} parent=11 // pred_check
        %p193 = pneg %p122
      $region26: #{tpu_custom_call.1} parent=11 // pred_check_branch
        %195 = sbr.rel (%p193) target = $region28
      $region27: #{tpu_custom_call.1} parent=11 // pred_region
        _
      $region28: #{tpu_custom_call.1} parent=11 // pred_fallthru
        _
      // Predicated region
      $region29: #{tpu_custom_call.1} parent=11 // pred_check
        %p196 = pneg %p143
      $region30: #{tpu_custom_call.1} parent=11 // pred_check_branch
        %198 = sbr.rel (%p196) target = $region32
      $region31: #{tpu_custom_call.1} parent=11 // pred_region
        _
      $region32: #{tpu_custom_call.1} parent=11 // pred_fallthru
        _
    $region12: #{tpu_custom_call.1} parent=5 // pred_fallthru
      _
    %p199 = scmp.lt.s32.totalorder %s12, 2
    // Predicated region
    $region33: #{tpu_custom_call.1} parent=5 // pred_check
      %p200 = pneg %p199
    $region34: #{tpu_custom_call.1} parent=5 // pred_check_branch
      %202 = sbr.rel (%p200) target = $region36
    $region35: #{tpu_custom_call.1} parent=5 // pred_region
      // Predicated region
      $region37: #{tpu_custom_call.1} parent=35 // pred_check
        %p203 = pneg %p32
      $region38: #{tpu_custom_call.1} parent=35 // pred_check_branch
        %205 = sbr.rel (%p203) target = $region40
      $region39: #{tpu_custom_call.1} parent=35 // pred_region
        %p206 = scmp.lt.s32.totalorder %s12, 1
        %s207 = scalar_select %p206, %s12, 1
        %s208 = smul.addr %s207, 13
        %s209 = smul.addr %s208, 4
        %s210 = scalar_lea.vmem %s0, %s209
      $region40: #{tpu_custom_call.1} parent=35 // pred_fallthru
        _
    $region36: #{tpu_custom_call.1} parent=5 // pred_fallthru
      _
    %p211 = scmp.le.s32.totalorder 1, %s12
    %p212 = scmp.lt.s32.totalorder %s12, 3
    %p213 = pnand %p211, %p212
    %p214 = pneg %p213
    // Predicated region
    $region41: #{tpu_custom_call.1} parent=5 // pred_check
      _
    $region42: #{tpu_custom_call.1} parent=5 // pred_check_branch
      %216 = sbr.rel (%p213) target = $region44
    $region43: #{tpu_custom_call.1} parent=5 // pred_region
      %s217 = ssub.s32 %s12, 1
      %p218 = scmp.lt.s32.totalorder %s17, 1
      %s219 = scalar_select %p218, %s17, 1
      %s220 = smul.addr %s219, 13
      %s221 = smul.addr %s220, 4
      %s222 = scalar_lea.vmem %s0, %s221
      %p223 = pneg %p38
      %p224 = pneg %p35
      %p225 = pneg %p59
      %p226 = pneg %p56
      %p227 = pneg %p80
      %p228 = pneg %p77
      %p229 = pneg %p101
      %p230 = pneg %p98
      %p231 = pneg %p122
      %p232 = pneg %p119
      %p233 = pneg %p143
      %p234 = pneg %p140
      %p235 = pneg %p169
      %p236 = pneg %p166
      %p237 = scmp.lt.s32.totalorder %s17, 1
      %s238 = scalar_select %p237, %s17, 1
      %s239 = smul.addr %s238, 10
      %s240 = smul.addr %s239, 4
      %s241 = scalar_lea.vmem %s6, %s240
      %p242 = scmp.lt.s32.totalorder %s17, 1
      %s243 = scalar_select %p242, %s17, 1
      %s244 = smul.addr %s243, 13
      %s245 = smul.addr %s244, 4
      %s246 = scalar_lea.vmem %s0, %s245
      %p247 = scmp.lt.s32.totalorder %s17, 1
      %s248 = scalar_select %p247, %s17, 1
      %s249 = smul.addr %s248, 10
      %s250 = smul.addr %s249, 4
      %s251 = scalar_lea.vmem %s6, %s250
      %v253 = vld [vmem:[%s246] sm:$0xf]
      %v254 = vld [vmem:[%s246 + $0x4] sm:$0xf]
      %v255 = vld [vmem:[%s246 + $0x8] sm:$0xf]
      %v256 = vld [vmem:[%s246 + $0xc] sm:$0xf]
      %v257 = vld [vmem:[%s246 + $0x10] sm:$0xf]
      %v258 = vld [vmem:[%s246 + $0x14] sm:$0xf]
      %v259 = vld [vmem:[%s246 + $0x18] sm:$0xf]
      %v260 = vld [vmem:[%s246 + $0x1c] sm:$0xf]
      %v261 = vld [vmem:[%s246 + $0x20] sm:$0xf]
      %v262 = vld [vmem:[%s246 + $0x24] sm:$0xf]
      %v263 = vld [vmem:[%s246 + $0x28] sm:$0xf]
      %v264 = vld [vmem:[%s246 + $0x2c] sm:$0xf]
      %v275 = vunpack.c.l.b16 %v253
      %v276 = vunpack.c.l.b16 %v254
      %v277 = vunpack.c.l.b16 %v255
      %v278 = vunpack.c.l.b16 %v256
      %v279 = vunpack.c.l.b16 %v257
      %v280 = vunpack.c.l.b16 %v258
      %v281 = vunpack.c.l.b16 %v259
      %v282 = vunpack.c.l.b16 %v260
      %v283 = vunpack.c.l.b16 %v261
      %v284 = vunpack.c.l.b16 %v262
      %v285 = vpack.c.b16 %v276, %v275
      %v286 = vpack.c.b16 %v278, %v277
      %v287 = vpack.c.b16 %v280, %v279
      %v288 = vpack.c.b16 %v282, %v281
      %v289 = vpack.c.b16 %v284, %v283
      %v291 = vunpack.c.l.b16 %v263
      %v292 = vpack.c.b16 %v291, %v291
      %vm293 = vsmask.f32 7424
      %v295 = vshrl.u32 %v285, 16
      %v297 = vshll.u32 %v285, 16
      %v299 = vrot.slane %v297, 1
      %v300 = vor.u32 %v295, %v299
      %v302 = vshll.u32 %v286, 16
      %v304 = vrot.slane %v302, 1
      %v305 = vsel %vm293, %v300, %v304
      %v306 = vshrl.u32 %v286, 16
      %v308 = vor.u32 %v306, %v304
      %v310 = vshll.u32 %v287, 16
      %v312 = vrot.slane %v310, 1
      %v313 = vsel %vm293, %v308, %v312
      %v314 = vshrl.u32 %v287, 16
      %v316 = vor.u32 %v314, %v312
      %v318 = vshll.u32 %v288, 16
      %v320 = vrot.slane %v318, 1
      %v321 = vsel %vm293, %v316, %v320
      %v322 = vshrl.u32 %v288, 16
      %v324 = vor.u32 %v322, %v320
      %v326 = vshll.u32 %v289, 16
      %v328 = vrot.slane %v326, 1
      %v329 = vsel %vm293, %v324, %v328
      %v330 = vshrl.u32 %v289, 16
      %v332 = vor.u32 %v330, %v328
      %v334 = vshll.u32 %v292, 16
      %v336 = vrot.slane %v334, 1
      %v337 = vsel %vm293, %v332, %v336
      %338 = vrot.lane.b32.xlu0 %v305, 16
      %v339 = vpop.permute.xlu0 %338
      %340 = vrot.lane.b32.xlu0 %v313, 16
      %v341 = vpop.permute.xlu0 %340
      %342 = vrot.lane.b32.xlu0 %v321, 16
      %v343 = vpop.permute.xlu0 %342
      %344 = vrot.lane.b32.xlu0 %v329, 16
      %v345 = vpop.permute.xlu0 %344
      %346 = vrot.lane.b32.xlu0 %v337, 16
      %v347 = vpop.permute.xlu0 %346
      %v349 = vunpack.c.l.b16 %v264
      %v350 = vpack.c.b16 %v277, %v276
      %v351 = vpack.c.b16 %v279, %v278
      %v352 = vpack.c.b16 %v281, %v280
      %v353 = vpack.c.b16 %v283, %v282
      %v354 = vpack.c.b16 %v291, %v284
      %v355 = vpack.c.b16 %v349, %v349
      %vm356 = vcmask 1046528
      %v357 = vrot.slane %v350, 1
      %v358 = vrot.slane %v351, 1
      %v359 = vsel %vm356, %v357, %v358
      %v360 = vrot.slane %v352, 1
      %v361 = vsel %vm356, %v358, %v360
      %v362 = vrot.slane %v353, 1
      %v363 = vsel %vm356, %v360, %v362
      %v364 = vrot.slane %v354, 1
      %v365 = vsel %vm356, %v362, %v364
      %v366 = vrot.slane %v355, 1
      %v367 = vsel %vm356, %v364, %v366
      %368 = vrot.lane.b32.xlu0 %v359, 32
      %v369 = vpop.permute.xlu0 %368
      %370 = vrot.lane.b32.xlu0 %v361, 32
      %v371 = vpop.permute.xlu0 %370
      %372 = vrot.lane.b32.xlu0 %v363, 32
      %v373 = vpop.permute.xlu0 %372
      %374 = vrot.lane.b32.xlu0 %v365, 32
      %v375 = vpop.permute.xlu0 %374
      %376 = vrot.lane.b32.xlu0 %v367, 32
      %v377 = vpop.permute.xlu0 %376
      %vm378 = vsmask.f32 6400
      %v380 = vshrl.u32 %v350, 16
      %v382 = vrot.slane %v380, 1
      %v383 = vshll.u32 %v350, 16
      %v385 = vrot.slane %v383, 2
      %v386 = vor.u32 %v382, %v385
      %v388 = vshrl.u32 %v351, 16
      %v390 = vrot.slane %v388, 1
      %v391 = vshll.u32 %v351, 16
      %v393 = vrot.slane %v391, 2
      %v394 = vor.u32 %v390, %v393
      %v395 = vsel %vm378, %v386, %v394
      %v397 = vshrl.u32 %v352, 16
      %v399 = vrot.slane %v397, 1
      %v400 = vshll.u32 %v352, 16
      %v402 = vrot.slane %v400, 2
      %v403 = vor.u32 %v399, %v402
      %v404 = vsel %vm378, %v394, %v403
      %v406 = vshrl.u32 %v353, 16
      %v408 = vrot.slane %v406, 1
      %v409 = vshll.u32 %v353, 16
      %v411 = vrot.slane %v409, 2
      %v412 = vor.u32 %v408, %v411
      %v413 = vsel %vm378, %v403, %v412
      %v415 = vshrl.u32 %v354, 16
      %v417 = vrot.slane %v415, 1
      %v418 = vshll.u32 %v354, 16
      %v420 = vrot.slane %v418, 2
      %v421 = vor.u32 %v417, %v420
      %v422 = vsel %vm378, %v412, %v421
      %v424 = vshrl.u32 %v355, 16
      %v426 = vrot.slane %v424, 1
      %v427 = vshll.u32 %v355, 16
      %v429 = vrot.slane %v427, 2
      %v430 = vor.u32 %v426, %v429
      %v431 = vsel %vm378, %v421, %v430
      %432 = vrot.lane.b32.xlu0 %v395, 48
      %v433 = vpop.permute.xlu0 %432
      %434 = vrot.lane.b32.xlu0 %v404, 48
      %v435 = vpop.permute.xlu0 %434
      %436 = vrot.lane.b32.xlu0 %v413, 48
      %v437 = vpop.permute.xlu0 %436
      %438 = vrot.lane.b32.xlu0 %v422, 48
      %v439 = vpop.permute.xlu0 %438
      %440 = vrot.lane.b32.xlu0 %v431, 48
      %v441 = vpop.permute.xlu0 %440
      %vm442 = vcmask 130048
      %v444 = vsel %vm442, %v285, %v339
      %v446 = vsel %vm442, %v286, %v341
      %v448 = vsel %vm442, %v287, %v343
      %v450 = vsel %vm442, %v288, %v345
      %v452 = vsel %vm442, %v289, %v347
      %vm453 = vcmask 261120
      %v455 = vsel %vm453, %v444, %v369
      %v457 = vsel %vm453, %v446, %v371
      %v459 = vsel %vm453, %v448, %v373
      %v461 = vsel %vm453, %v450, %v375
      %v463 = vsel %vm453, %v452, %v377
      %vm464 = vcmask 392192
      %v466 = vsel %vm464, %v455, %v433
      %v468 = vsel %vm464, %v457, %v435
      %v470 = vsel %vm464, %v459, %v437
      %v472 = vsel %vm464, %v461, %v439
      %v474 = vsel %vm464, %v463, %v441
      %v475 = vld [vmem:[%s1] sm:$0xf]
      %v476 = vld [vmem:[%s1 + $0x4] sm:$0xf]
      %v477 = vld [vmem:[%s1 + $0x8] sm:$0xf]
      %v478 = vld [vmem:[%s1 + $0xc] sm:$0xf]
      %v479 = vld [vmem:[%s1 + $0x10] sm:$0xf]
      %v480 = vld [vmem:[%s1 + $0x14] sm:$0xf]
      %v481 = vld [vmem:[%s1 + $0x18] sm:$0xf]
      %v482 = vld [vmem:[%s1 + $0x1c] sm:$0xf]
      %v483 = vld [vmem:[%s2] sm:$0x1]
      %v485 = vlaneseq
      %v486 = vshrl.u32 %v485, 7
      %v487 = vsub.s32 0, %v486
      %v488 = vrot.slane %v483, %v487
      %v498 = vunpack.c.l.b16 %v475
      %v499 = vunpack.c.l.b16 %v476
      %v500 = vunpack.c.l.b16 %v477
      %v501 = vunpack.c.l.b16 %v478
      %v502 = vunpack.c.l.b16 %v479
      %v503 = vunpack.c.l.b16 %v480
      %v504 = vunpack.c.l.b16 %v481
      %v505 = vunpack.c.l.b16 %v482
      %v506 = vpack.c.b16 %v499, %v498
      %v507 = vpack.c.b16 %v501, %v500
      %v508 = vpack.c.b16 %v503, %v502
      %v509 = vpack.c.b16 %v505, %v504
      %vm514 = vcmask 523264
      %v515 = vsel %vm514, %v466, 0
      %v517 = vsel %vm514, %v468, 0
      %v519 = vsel %vm514, %v470, 0
      %v521 = vsel %vm514, %v472, 0
      %v523 = vsel %vm514, %v474, 0
      %525 = vmatprep.subr.bf16.mxu0 0
      %526 = vmatpush1.bf16.msra.mxu0 %v506
      %527 = vmatprep.subr.bf16.mxu0 0
      %528 = vmatpush1.bf16.msra.mxu0 %v507
      %529 = vmatprep.subr.bf16.mxu0 0
      %530 = vmatpush1.bf16.msra.mxu0 %v508
      %531 = vmatprep.subr.bf16.mxu0 0
      %532 = vmatpush1.bf16.msra.mxu0 %v509
      %533 = vmatprep.subr.bf16.mxu0 0
      %534 = vmatpush1.bf16.msra.mxu0 0
      %535 = vmatprep.subr.bf16.mxu0 0
      %536 = vmatpush1.bf16.msra.mxu0 0
      %537 = vmatprep.subr.bf16.mxu0 0
      %538 = vmatpush1.bf16.msra.mxu0 0
      %539 = vmatprep.subr.bf16.mxu0 0
      %540 = vmatpush1.bf16.msra.mxu0 0
      %541 = vmatprep.subr.bf16.mxu0 0
      %542 = vmatpush1.bf16.msra.mxu0 0
      %543 = vmatprep.subr.bf16.mxu0 0
      %544 = vmatpush1.bf16.msra.mxu0 0
      %545 = vmatprep.subr.bf16.mxu0 0
      %546 = vmatpush1.bf16.msra.mxu0 0
      %547 = vmatprep.subr.bf16.mxu0 0
      %548 = vmatpush1.bf16.msra.mxu0 0
      %549 = vmatprep.subr.bf16.mxu0 0
      %550 = vmatpush1.bf16.msra.mxu0 0
      %551 = vmatprep.subr.bf16.mxu0 0
      %552 = vmatpush1.bf16.msra.mxu0 0
      %553 = vmatprep.subr.bf16.mxu0 0
      %554 = vmatpush1.bf16.msra.mxu0 0
      %555 = vmatprep.subr.bf16.mxu0 0
      %556 = vmatpush1.bf16.msra.mxu0 0
      %557 = vmatprep.mubr.bf16.mxu0 0
      %558 = vmatmul.mubr.bf16.gmra.mrb[0].mxu0 %v515
      %v559 = vpop.f32.mrb[0].mxu0
      %v560 = vadd.f32 %v488, %v559
      %v561 = vpop.f32.mrb[0].mxu0
      %v562 = vpop.f32.mrb[0].mxu0
      %v563 = vadd.f32 %v488, %v562
      %v564 = vpop.f32.mrb[0].mxu0
      %565 = vmatprep.mubr.bf16.mxu0 0
      %566 = vmatmul.mubr.bf16.gmra.mrb[0].mxu0 %v517
      %v567 = vpop.f32.mrb[0].mxu0
      %v568 = vadd.f32 %v488, %v567
      %v569 = vpop.f32.mrb[0].mxu0
      %v570 = vpop.f32.mrb[0].mxu0
      %v571 = vadd.f32 %v488, %v570
      %v572 = vpop.f32.mrb[0].mxu0
      %573 = vmatprep.mubr.bf16.mxu0 0
      %574 = vmatmul.mubr.bf16.gmra.mrb[0].mxu0 %v519
      %v575 = vpop.f32.mrb[0].mxu0
      %v576 = vadd.f32 %v488, %v575
      %v577 = vpop.f32.mrb[0].mxu0
      %v578 = vpop.f32.mrb[0].mxu0
      %v579 = vadd.f32 %v488, %v578
      %v580 = vpop.f32.mrb[0].mxu0
      %581 = vmatprep.mubr.bf16.mxu0 0
      %582 = vmatmul.mubr.bf16.gmra.mrb[0].mxu0 %v521
      %v583 = vpop.f32.mrb[0].mxu0
      %v584 = vadd.f32 %v488, %v583
      %v585 = vpop.f32.mrb[0].mxu0
      %v586 = vpop.f32.mrb[0].mxu0
      %v587 = vadd.f32 %v488, %v586
      %v588 = vpop.f32.mrb[0].mxu0
      %589 = vmatprep.mubr.bf16.mxu0 0
      %590 = vmatmul.mubr.bf16.gmra.mrb[0].mxu0 %v523
      %v591 = vpop.f32.mrb[0].mxu0
      %v592 = vadd.f32 %v488, %v591
      %v593 = vpop.f32.mrb[0].mxu0
      %v594 = vpop.f32.mrb[0].mxu0
      %v595 = vadd.f32 %v488, %v594
      %v596 = vpop.f32.mrb[0].mxu0
      %597 = vdwg.mxu0
      %v598 = vld [vmem:[%s5] sm:$0xff]
      %v599 = vld [vmem:[%s5 + $0x8] sm:$0xff]
      %v600 = vld [vmem:[%s5 + $0x10] sm:$0xff]
      %v601 = vld [vmem:[%s5 + $0x18] sm:$0xff]
      %v602 = vld [vmem:[%s5 + $0x20] sm:$0xff]
      %v603 = vld [vmem:[%s5 + $0x28] sm:$0xff]
      %v604 = vld [vmem:[%s5 + $0x30] sm:$0xff]
      %v605 = vld [vmem:[%s5 + $0x38] sm:$0xff]
      %v606 = vld [vmem:[%s5 + $0x40] sm:$0xff]
      %v607 = vld [vmem:[%s5 + $0x48] sm:$0xff]
      %v608 = vmax.f32 %v560, 0.0
      %v609 = vmax.f32 %v563, 0.0
      %v610 = vmax.f32 %v568, 0.0
      %v611 = vmax.f32 %v571, 0.0
      %v612 = vmax.f32 %v576, 0.0
      %v613 = vmax.f32 %v579, 0.0
      %v614 = vmax.f32 %v584, 0.0
      %v615 = vmax.f32 %v587, 0.0
      %v616 = vmax.f32 %v592, 0.0
      %v617 = vmax.f32 %v595, 0.0
      %619 = vset.pattern.permute.xlu0 0
      %620 = vperm.xlu0 %619, %v598
      %v621 = vpop.permute.xlu0 %620
      %624 = vset.pattern.permute.xlu0 0
      %625 = vperm.xlu0 %624, %v599
      %v626 = vpop.permute.xlu0 %625
      %629 = vset.pattern.permute.xlu0 0
      %630 = vperm.xlu0 %629, %v600
      %v631 = vpop.permute.xlu0 %630
      %634 = vset.pattern.permute.xlu0 0
      %635 = vperm.xlu0 %634, %v601
      %v636 = vpop.permute.xlu0 %635
      %639 = vset.pattern.permute.xlu0 0
      %640 = vperm.xlu0 %639, %v602
      %v641 = vpop.permute.xlu0 %640
      %644 = vset.pattern.permute.xlu0 0
      %645 = vperm.xlu0 %644, %v603
      %v646 = vpop.permute.xlu0 %645
      %649 = vset.pattern.permute.xlu0 0
      %650 = vperm.xlu0 %649, %v604
      %v651 = vpop.permute.xlu0 %650
      %654 = vset.pattern.permute.xlu0 0
      %655 = vperm.xlu0 %654, %v605
      %v656 = vpop.permute.xlu0 %655
      %659 = vset.pattern.permute.xlu0 0
      %660 = vperm.xlu0 %659, %v606
      %v661 = vpop.permute.xlu0 %660
      %664 = vset.pattern.permute.xlu0 0
      %665 = vperm.xlu0 %664, %v607
      %v666 = vpop.permute.xlu0 %665
      %v668 = vmul.f32 %v608, %v621
      %v669 = vmul.f32 %v609, %v626
      %v670 = vmul.f32 %v610, %v631
      %v671 = vmul.f32 %v611, %v636
      %v672 = vmul.f32 %v612, %v641
      %v673 = vmul.f32 %v613, %v646
      %v674 = vmul.f32 %v614, %v651
      %v675 = vmul.f32 %v615, %v656
      %v676 = vmul.f32 %v616, %v661
      %v677 = vmul.f32 %v617, %v666
      %v678 = vpack.c.bf16 %v669, %v668
      %v679 = vpack.c.bf16 %v671, %v670
      %v680 = vpack.c.bf16 %v673, %v672
      %v681 = vpack.c.bf16 %v675, %v674
      %v682 = vpack.c.bf16 %v677, %v676
      %vm683 = vsmask.f32 5376
      %v685 = vshrl.u32 %v678, 16
      %v687 = vrot.slane %v685, 2
      %v688 = vshll.u32 %v678, 16
      %v690 = vrot.slane %v688, 3
      %v691 = vor.u32 %v687, %v690
      %v693 = vshrl.u32 %v679, 16
      %v695 = vrot.slane %v693, 2
      %v696 = vshll.u32 %v679, 16
      %v698 = vrot.slane %v696, 3
      %v699 = vor.u32 %v695, %v698
      %v700 = vsel %vm683, %v691, %v699
      %v702 = vshrl.u32 %v680, 16
      %v704 = vrot.slane %v702, 2
      %v705 = vshll.u32 %v680, 16
      %v707 = vrot.slane %v705, 3
      %v708 = vor.u32 %v704, %v707
      %v709 = vsel %vm683, %v699, %v708
      %v711 = vshrl.u32 %v681, 16
      %v713 = vrot.slane %v711, 2
      %v714 = vshll.u32 %v681, 16
      %v716 = vrot.slane %v714, 3
      %v717 = vor.u32 %v713, %v716
      %v718 = vsel %vm683, %v708, %v717
      %v720 = vshrl.u32 %v682, 16
      %v722 = vrot.slane %v720, 2
      %v723 = vshll.u32 %v682, 16
      %v725 = vrot.slane %v723, 3
      %v726 = vor.u32 %v722, %v725
      %v727 = vsel %vm683, %v717, %v726
      %vm730 = vcmask 1045504
      %vm731 = vmand %vm730, %vm683
      %v732 = vsel %vm731, 0, %v691
      %v733 = vsel %vm731, %v726, 0
      %v735 = vshrl.u32 %v732, 16
      %v737 = vshll.u32 %v732, 16
      %v739 = vrot.slane %v737, 1
      %v740 = vor.u32 %v735, %v739
      %v742 = vshll.u32 %v700, 16
      %v744 = vrot.slane %v742, 1
      %v745 = vsel %vm293, %v740, %v744
      %v746 = vshrl.u32 %v700, 16
      %v748 = vor.u32 %v746, %v744
      %v750 = vshll.u32 %v709, 16
      %v752 = vrot.slane %v750, 1
      %v753 = vsel %vm293, %v748, %v752
      %v754 = vshrl.u32 %v709, 16
      %v756 = vor.u32 %v754, %v752
      %v758 = vshll.u32 %v718, 16
      %v760 = vrot.slane %v758, 1
      %v761 = vsel %vm293, %v756, %v760
      %v762 = vshrl.u32 %v718, 16
      %v764 = vor.u32 %v762, %v760
      %v766 = vshll.u32 %v727, 16
      %v768 = vrot.slane %v766, 1
      %v769 = vsel %vm293, %v764, %v768
      %v770 = vshrl.u32 %v727, 16
      %v772 = vor.u32 %v770, %v768
      %v774 = vshll.u32 %v733, 16
      %v776 = vrot.slane %v774, 1
      %v777 = vsel %vm293, %v772, %v776
      %778 = vrot.lane.b32.xlu0 %v745, 8
      %v779 = vpop.permute.xlu0 %778
      %780 = vrot.lane.b32.xlu0 %v753, 8
      %v781 = vpop.permute.xlu0 %780
      %782 = vrot.lane.b32.xlu0 %v761, 8
      %v783 = vpop.permute.xlu0 %782
      %784 = vrot.lane.b32.xlu0 %v769, 8
      %v785 = vpop.permute.xlu0 %784
      %786 = vrot.lane.b32.xlu0 %v777, 8
      %v787 = vpop.permute.xlu0 %786
      %v790 = vrot.slane %v732, 1
      %v791 = vrot.slane %v700, 1
      %v792 = vsel %vm356, %v790, %v791
      %v793 = vrot.slane %v709, 1
      %v794 = vsel %vm356, %v791, %v793
      %v795 = vrot.slane %v718, 1
      %v796 = vsel %vm356, %v793, %v795
      %v797 = vrot.slane %v727, 1
      %v798 = vsel %vm356, %v795, %v797
      %v799 = vrot.slane %v733, 1
      %v800 = vsel %vm356, %v797, %v799
      %801 = vrot.lane.b32.xlu0 %v792, 16
      %v802 = vpop.permute.xlu0 %801
      %803 = vrot.lane.b32.xlu0 %v794, 16
      %v804 = vpop.permute.xlu0 %803
      %805 = vrot.lane.b32.xlu0 %v796, 16
      %v806 = vpop.permute.xlu0 %805
      %807 = vrot.lane.b32.xlu0 %v798, 16
      %v808 = vpop.permute.xlu0 %807
      %809 = vrot.lane.b32.xlu0 %v800, 16
      %v810 = vpop.permute.xlu0 %809
      %vm811 = vcmask 1042432
      %v812 = vrot.slane %v732, 5
      %v813 = vrot.slane %v700, 5
      %v814 = vsel %vm811, %v812, %v813
      %v815 = vrot.slane %v709, 5
      %v816 = vsel %vm811, %v813, %v815
      %v817 = vrot.slane %v718, 5
      %v818 = vsel %vm811, %v815, %v817
      %v819 = vrot.slane %v727, 5
      %v820 = vsel %vm811, %v817, %v819
      %v821 = vrot.slane %v733, 5
      %v822 = vsel %vm811, %v819, %v821
      %823 = vrot.lane.b32.xlu0 %v814, 24
      %v824 = vpop.permute.xlu0 %823
      %825 = vrot.lane.b32.xlu0 %v816, 24
      %v826 = vpop.permute.xlu0 %825
      %827 = vrot.lane.b32.xlu0 %v818, 24
      %v828 = vpop.permute.xlu0 %827
      %829 = vrot.lane.b32.xlu0 %v820, 24
      %v830 = vpop.permute.xlu0 %829
      %831 = vrot.lane.b32.xlu0 %v822, 24
      %v832 = vpop.permute.xlu0 %831
      %vm833 = vsmask.f32 2304
      %v834 = vrot.slane %v735, 5
      %v835 = vrot.slane %v737, 6
      %v836 = vor.u32 %v834, %v835
      %v837 = vrot.slane %v746, 5
      %v838 = vrot.slane %v742, 6
      %v839 = vor.u32 %v837, %v838
      %v840 = vsel %vm833, %v836, %v839
      %v841 = vrot.slane %v754, 5
      %v842 = vrot.slane %v750, 6
      %v843 = vor.u32 %v841, %v842
      %v844 = vsel %vm833, %v839, %v843
      %v845 = vrot.slane %v762, 5
      %v846 = vrot.slane %v758, 6
      %v847 = vor.u32 %v845, %v846
      %v848 = vsel %vm833, %v843, %v847
      %v849 = vrot.slane %v770, 5
      %v850 = vrot.slane %v766, 6
      %v851 = vor.u32 %v849, %v850
      %v852 = vsel %vm833, %v847, %v851
      %v853 = vshrl.u32 %v733, 16
      %v855 = vrot.slane %v853, 5
      %v856 = vrot.slane %v774, 6
      %v857 = vor.u32 %v855, %v856
      %v858 = vsel %vm833, %v851, %v857
      %859 = vrot.lane.b32.xlu0 %v840, 32
      %v860 = vpop.permute.xlu0 %859
      %861 = vrot.lane.b32.xlu0 %v844, 32
      %v862 = vpop.permute.xlu0 %861
      %863 = vrot.lane.b32.xlu0 %v848, 32
      %v864 = vpop.permute.xlu0 %863
      %865 = vrot.lane.b32.xlu0 %v852, 32
      %v866 = vpop.permute.xlu0 %865
      %867 = vrot.lane.b32.xlu0 %v858, 32
      %v868 = vpop.permute.xlu0 %867
      %vm869 = vcmask 1041408
      %v870 = vrot.slane %v732, 6
      %v871 = vrot.slane %v700, 6
      %v872 = vsel %vm869, %v870, %v871
      %v873 = vrot.slane %v709, 6
      %v874 = vsel %vm869, %v871, %v873
      %v875 = vrot.slane %v718, 6
      %v876 = vsel %vm869, %v873, %v875
      %v877 = vrot.slane %v727, 6
      %v878 = vsel %vm869, %v875, %v877
      %v879 = vrot.slane %v733, 6
      %v880 = vsel %vm869, %v877, %v879
      %881 = vrot.lane.b32.xlu0 %v872, 40
      %v882 = vpop.permute.xlu0 %881
      %883 = vrot.lane.b32.xlu0 %v874, 40
      %v884 = vpop.permute.xlu0 %883
      %885 = vrot.lane.b32.xlu0 %v876, 40
      %v886 = vpop.permute.xlu0 %885
      %887 = vrot.lane.b32.xlu0 %v878, 40
      %v888 = vpop.permute.xlu0 %887
      %889 = vrot.lane.b32.xlu0 %v880, 40
      %v890 = vpop.permute.xlu0 %889
      %v892 = vrot.slane %v700, 2
      %v893 = vrot.slane %v709, 2
      %v894 = vsel %vm730, %v892, %v893
      %v895 = vrot.slane %v718, 2
      %v896 = vsel %vm730, %v893, %v895
      %v897 = vrot.slane %v727, 2
      %v898 = vsel %vm730, %v895, %v897
      %v899 = vrot.slane %v733, 2
      %v900 = vsel %vm730, %v897, %v899
      %v901 = vrot.slane 0, 2
      %v902 = vsel %vm730, %v899, %v901
      %903 = vrot.lane.b32.xlu0 %v894, 48
      %v904 = vpop.permute.xlu0 %903
      %905 = vrot.lane.b32.xlu0 %v896, 48
      %v906 = vpop.permute.xlu0 %905
      %907 = vrot.lane.b32.xlu0 %v898, 48
      %v908 = vpop.permute.xlu0 %907
      %909 = vrot.lane.b32.xlu0 %v900, 48
      %v910 = vpop.permute.xlu0 %909
      %911 = vrot.lane.b32.xlu0 %v902, 48
      %v912 = vpop.permute.xlu0 %911
      %v913 = vrot.slane %v746, 2
      %v914 = vrot.slane %v742, 3
      %v915 = vor.u32 %v913, %v914
      %v916 = vrot.slane %v754, 2
      %v917 = vrot.slane %v750, 3
      %v918 = vor.u32 %v916, %v917
      %v919 = vsel %vm683, %v915, %v918
      %v920 = vrot.slane %v762, 2
      %v921 = vrot.slane %v758, 3
      %v922 = vor.u32 %v920, %v921
      %v923 = vsel %vm683, %v918, %v922
      %v924 = vrot.slane %v770, 2
      %v925 = vrot.slane %v766, 3
      %v926 = vor.u32 %v924, %v925
      %v927 = vsel %vm683, %v922, %v926
      %v928 = vrot.slane %v853, 2
      %v929 = vrot.slane %v774, 3
      %v930 = vor.u32 %v928, %v929
      %v931 = vsel %vm683, %v926, %v930
      %v933 = vshrl.u32 0, 16
      %v935 = vrot.slane %v933, 2
      %v936 = vshll.u32 0, 16
      %v938 = vrot.slane %v936, 3
      %v939 = vor.u32 %v935, %v938
      %v940 = vsel %vm683, %v930, %v939
      %941 = vrot.lane.b32.xlu0 %v919, 56
      %v942 = vpop.permute.xlu0 %941
      %943 = vrot.lane.b32.xlu0 %v923, 56
      %v944 = vpop.permute.xlu0 %943
      %945 = vrot.lane.b32.xlu0 %v927, 56
      %v946 = vpop.permute.xlu0 %945
      %947 = vrot.lane.b32.xlu0 %v931, 56
      %v948 = vpop.permute.xlu0 %947
      %949 = vrot.lane.b32.xlu0 %v940, 56
      %v950 = vpop.permute.xlu0 %949
      %vm951 = vcmask 1044480
      %v952 = vrot.slane %v700, 3
      %v953 = vrot.slane %v709, 3
      %v954 = vsel %vm951, %v952, %v953
      %v955 = vrot.slane %v718, 3
      %v956 = vsel %vm951, %v953, %v955
      %v957 = vrot.slane %v727, 3
      %v958 = vsel %vm951, %v955, %v957
      %v959 = vrot.slane %v733, 3
      %v960 = vsel %vm951, %v957, %v959
      %v961 = vrot.slane 0, 3
      %v962 = vsel %vm951, %v959, %v961
      %963 = vrot.lane.b32.xlu0 %v954, 64
      %v964 = vpop.permute.xlu0 %963
      %965 = vrot.lane.b32.xlu0 %v956, 64
      %v966 = vpop.permute.xlu0 %965
      %967 = vrot.lane.b32.xlu0 %v958, 64
      %v968 = vpop.permute.xlu0 %967
      %969 = vrot.lane.b32.xlu0 %v960, 64
      %v970 = vpop.permute.xlu0 %969
      %971 = vrot.lane.b32.xlu0 %v962, 64
      %v972 = vpop.permute.xlu0 %971
      %vm973 = vcmask 64512
      %v975 = vsel %vm973, %v732, %v779
      %v977 = vsel %vm973, %v700, %v781
      %v979 = vsel %vm973, %v709, %v783
      %v981 = vsel %vm973, %v718, %v785
      %v983 = vsel %vm973, %v727, %v787
      %v985 = vsel %vm442, %v975, %v802
      %v987 = vsel %vm442, %v977, %v804
      %v989 = vsel %vm442, %v979, %v806
      %v991 = vsel %vm442, %v981, %v808
      %v993 = vsel %vm442, %v983, %v810
      %vm994 = vcmask 195584
      %v996 = vsel %vm994, %v985, %v824
      %v998 = vsel %vm994, %v987, %v826
      %v1000 = vsel %vm994, %v989, %v828
      %v1002 = vsel %vm994, %v991, %v830
      %v1004 = vsel %vm994, %v993, %v832
      %v1006 = vsel %vm453, %v996, %v860
      %v1008 = vsel %vm453, %v998, %v862
      %v1010 = vsel %vm453, %v1000, %v864
      %v1012 = vsel %vm453, %v1002, %v866
      %v1014 = vsel %vm453, %v1004, %v868
      %vm1015 = vcmask 326656
      %v1017 = vsel %vm1015, %v1006, %v882
      %v1019 = vsel %vm1015, %v1008, %v884
      %v1021 = vsel %vm1015, %v1010, %v886
      %v1023 = vsel %vm1015, %v1012, %v888
      %v1025 = vsel %vm1015, %v1014, %v890
      %v1027 = vsel %vm464, %v1017, %v904
      %v1029 = vsel %vm464, %v1019, %v906
      %v1031 = vsel %vm464, %v1021, %v908
      %v1033 = vsel %vm464, %v1023, %v910
      %v1035 = vsel %vm464, %v1025, %v912
      %vm1036 = vcmask 457728
      %v1038 = vsel %vm1036, %v1027, %v942
      %v1040 = vsel %vm1036, %v1029, %v944
      %v1042 = vsel %vm1036, %v1031, %v946
      %v1044 = vsel %vm1036, %v1033, %v948
      %v1046 = vsel %vm1036, %v1035, %v950
      %v1048 = vsel %vm514, %v1038, %v964
      %v1050 = vsel %vm514, %v1040, %v966
      %v1052 = vsel %vm514, %v1042, %v968
      %v1054 = vsel %vm514, %v1044, %v970
      %v1056 = vsel %vm514, %v1046, %v972
      %v1057 = vld [vmem:[%s3] sm:$0xf]
      %v1058 = vld [vmem:[%s3 + $0x4] sm:$0xf]
      %v1059 = vld [vmem:[%s3 + $0x8] sm:$0xf]
      %v1060 = vld [vmem:[%s3 + $0xc] sm:$0xf]
      %v1061 = vld [vmem:[%s3 + $0x10] sm:$0xf]
      %v1062 = vld [vmem:[%s3 + $0x14] sm:$0xf]
      %v1063 = vld [vmem:[%s3 + $0x18] sm:$0xf]
      %v1064 = vld [vmem:[%s3 + $0x1c] sm:$0xf]
      %v1065 = vld [vmem:[%s3 + $0x20] sm:$0xf]
      %v1066 = vld [vmem:[%s4] sm:$0x1]
      %v1068 = vlaneseq
      %v1069 = vshrl.u32 %v1068, 7
      %v1070 = vsub.s32 0, %v1069
      %v1071 = vrot.slane %v1066, %v1070
      %v1082 = vunpack.c.l.b16 %v1057
      %v1083 = vunpack.c.l.b16 %v1058
      %v1084 = vunpack.c.l.b16 %v1059
      %v1085 = vunpack.c.l.b16 %v1060
      %v1086 = vunpack.c.l.b16 %v1061
      %v1087 = vunpack.c.l.b16 %v1062
      %v1088 = vunpack.c.l.b16 %v1063
      %v1089 = vunpack.c.l.b16 %v1064
      %v1090 = vunpack.c.l.b16 %v1065
      %v1091 = vpack.c.b16 %v1083, %v1082
      %v1092 = vpack.c.b16 %v1085, %v1084
      %v1093 = vpack.c.b16 %v1087, %v1086
      %v1094 = vpack.c.b16 %v1089, %v1088
      %v1095 = vpack.c.b16 %v1090, %v1090
      %vm1100 = vcmask 588800
      %v1101 = vsel %vm1100, %v1048, 0
      %v1103 = vsel %vm1100, %v1050, 0
      %v1105 = vsel %vm1100, %v1052, 0
      %v1107 = vsel %vm1100, %v1054, 0
      %v1109 = vsel %vm1100, %v1056, 0
      %vm1111 = vcmask 1043456
      %v1113 = vsel %vm1111, %v1095, 0
      %1115 = vmatprep.subr.bf16.mxu0 0
      %1116 = vmatpush1.bf16.msra.mxu0 %v1091
      %1117 = vmatprep.subr.bf16.mxu0 0
      %1118 = vmatpush1.bf16.msra.mxu0 %v1092
      %1119 = vmatprep.subr.bf16.mxu0 0
      %1120 = vmatpush1.bf16.msra.mxu0 %v1093
      %1121 = vmatprep.subr.bf16.mxu0 0
      %1122 = vmatpush1.bf16.msra.mxu0 %v1094
      %1123 = vmatprep.subr.bf16.mxu0 0
      %1124 = vmatpush1.bf16.msra.mxu0 %v1113
      %1125 = vmatprep.subr.bf16.mxu0 0
      %1126 = vmatpush1.bf16.msra.mxu0 0
      %1127 = vmatprep.subr.bf16.mxu0 0
      %1128 = vmatpush1.bf16.msra.mxu0 0
      %1129 = vmatprep.subr.bf16.mxu0 0
      %1130 = vmatpush1.bf16.msra.mxu0 0
      %1131 = vmatprep.subr.bf16.mxu0 0
      %1132 = vmatpush1.bf16.msra.mxu0 0
      %1133 = vmatprep.subr.bf16.mxu0 0
      %1134 = vmatpush1.bf16.msra.mxu0 0
      %1135 = vmatprep.subr.bf16.mxu0 0
      %1136 = vmatpush1.bf16.msra.mxu0 0
      %1137 = vmatprep.subr.bf16.mxu0 0
      %1138 = vmatpush1.bf16.msra.mxu0 0
      %1139 = vmatprep.subr.bf16.mxu0 0
      %1140 = vmatpush1.bf16.msra.mxu0 0
      %1141 = vmatprep.subr.bf16.mxu0 0
      %1142 = vmatpush1.bf16.msra.mxu0 0
      %1143 = vmatprep.subr.bf16.mxu0 0
      %1144 = vmatpush1.bf16.msra.mxu0 0
      %1145 = vmatprep.subr.bf16.mxu0 0
      %1146 = vmatpush1.bf16.msra.mxu0 0
      %1147 = vmatprep.mubr.bf16.mxu0 0
      %1148 = vmatmul.mubr.bf16.gmra.mrb[0].mxu0 %v1101
      %v1149 = vpop.f32.mrb[0].mxu0
      %v1150 = vadd.f32 %v1071, %v1149
      %v1151 = vpop.f32.mrb[0].mxu0
      %v1152 = vpop.f32.mrb[0].mxu0
      %v1153 = vadd.f32 %v1071, %v1152
      %v1154 = vpop.f32.mrb[0].mxu0
      %1155 = vmatprep.mubr.bf16.mxu0 0
      %1156 = vmatmul.mubr.bf16.gmra.mrb[0].mxu0 %v1103
      %v1157 = vpop.f32.mrb[0].mxu0
      %v1158 = vadd.f32 %v1071, %v1157
      %v1159 = vpop.f32.mrb[0].mxu0
      %v1160 = vpop.f32.mrb[0].mxu0
      %v1161 = vadd.f32 %v1071, %v1160
      %v1162 = vpop.f32.mrb[0].mxu0
      %1163 = vmatprep.mubr.bf16.mxu0 0
      %1164 = vmatmul.mubr.bf16.gmra.mrb[0].mxu0 %v1105
      %v1165 = vpop.f32.mrb[0].mxu0
      %v1166 = vadd.f32 %v1071, %v1165
      %v1167 = vpop.f32.mrb[0].mxu0
      %v1168 = vpop.f32.mrb[0].mxu0
      %v1169 = vadd.f32 %v1071, %v1168
      %v1170 = vpop.f32.mrb[0].mxu0
      %1171 = vmatprep.mubr.bf16.mxu0 0
      %1172 = vmatmul.mubr.bf16.gmra.mrb[0].mxu0 %v1107
      %v1173 = vpop.f32.mrb[0].mxu0
      %v1174 = vadd.f32 %v1071, %v1173
      %v1175 = vpop.f32.mrb[0].mxu0
      %v1176 = vpop.f32.mrb[0].mxu0
      %v1177 = vadd.f32 %v1071, %v1176
      %v1178 = vpop.f32.mrb[0].mxu0
      %1179 = vmatprep.mubr.bf16.mxu0 0
      %1180 = vmatmul.mubr.bf16.gmra.mrb[0].mxu0 %v1109
      %v1181 = vpop.f32.mrb[0].mxu0
      %v1182 = vadd.f32 %v1071, %v1181
      %v1183 = vpop.f32.mrb[0].mxu0
      %v1184 = vpop.f32.mrb[0].mxu0
      %v1185 = vadd.f32 %v1071, %v1184
      %v1186 = vpop.f32.mrb[0].mxu0
      %1187 = vdwg.mxu0
      %1198 = vrot.lane.b32.xlu0 %v560, 120
      %v1199 = vpop.permute.xlu0 %1198
      %1200 = vrot.lane.b32.xlu0 %v563, 120
      %v1201 = vpop.permute.xlu0 %1200
      %1202 = vrot.lane.b32.xlu0 %v568, 120
      %v1203 = vpop.permute.xlu0 %1202
      %1204 = vrot.lane.b32.xlu0 %v571, 120
      %v1205 = vpop.permute.xlu0 %1204
      %1206 = vrot.lane.b32.xlu0 %v576, 120
      %v1207 = vpop.permute.xlu0 %1206
      %1208 = vrot.lane.b32.xlu0 %v579, 120
      %v1209 = vpop.permute.xlu0 %1208
      %1210 = vrot.lane.b32.xlu0 %v584, 120
      %v1211 = vpop.permute.xlu0 %1210
      %1212 = vrot.lane.b32.xlu0 %v587, 120
      %v1213 = vpop.permute.xlu0 %1212
      %1214 = vrot.lane.b32.xlu0 %v592, 120
      %v1215 = vpop.permute.xlu0 %1214
      %1216 = vrot.lane.b32.xlu0 %v595, 120
      %v1217 = vpop.permute.xlu0 %1216
      %v1228 = vadd.f32 %v1150, %v1199
      %v1229 = vadd.f32 %v1153, %v1201
      %v1230 = vadd.f32 %v1158, %v1203
      %v1231 = vadd.f32 %v1161, %v1205
      %v1232 = vadd.f32 %v1166, %v1207
      %v1233 = vadd.f32 %v1169, %v1209
      %v1234 = vadd.f32 %v1174, %v1211
      %v1235 = vadd.f32 %v1177, %v1213
      %v1236 = vadd.f32 %v1182, %v1215
      %v1237 = vadd.f32 %v1185, %v1217
      %v1238 = vmax.f32 %v1228, 0.0
      %v1239 = vmax.f32 %v1229, 0.0
      %v1240 = vmax.f32 %v1230, 0.0
      %v1241 = vmax.f32 %v1231, 0.0
      %v1242 = vmax.f32 %v1232, 0.0
      %v1243 = vmax.f32 %v1233, 0.0
      %v1244 = vmax.f32 %v1234, 0.0
      %v1245 = vmax.f32 %v1235, 0.0
      %v1246 = vmax.f32 %v1236, 0.0
      %v1247 = vmax.f32 %v1237, 0.0
      %v1248 = vpack.c.bf16 %v1239, %v1238
      %v1249 = vpack.c.bf16 %v1241, %v1240
      %v1250 = vpack.c.bf16 %v1243, %v1242
      %v1251 = vpack.c.bf16 %v1245, %v1244
      %v1252 = vpack.c.bf16 %v1247, %v1246
      %v1258 = vunpack.c.l.b16 %v1248
      %v1259 = vunpack.c.h.b16 %v1248
      %v1260 = vunpack.c.l.b16 %v1249
      %v1261 = vunpack.c.h.b16 %v1249
      %v1262 = vunpack.c.l.b16 %v1250
      %v1263 = vunpack.c.h.b16 %v1250
      %v1264 = vunpack.c.l.b16 %v1251
      %v1265 = vunpack.c.h.b16 %v1251
      %v1266 = vunpack.c.l.b16 %v1252
      %v1267 = vunpack.c.h.b16 %v1252
      %v1268 = vpack.c.b16 %v1258, %v1258
      %v1269 = vpack.c.b16 %v1259, %v1259
      %v1270 = vpack.c.b16 %v1260, %v1260
      %v1271 = vpack.c.b16 %v1261, %v1261
      %v1272 = vpack.c.b16 %v1262, %v1262
      %v1273 = vpack.c.b16 %v1263, %v1263
      %v1274 = vpack.c.b16 %v1264, %v1264
      %v1275 = vpack.c.b16 %v1265, %v1265
      %v1276 = vpack.c.b16 %v1266, %v1266
      %v1277 = vpack.c.b16 %v1267, %v1267
      %vm1288 = vcmask 60416
      %1289 = vst.msk [vmem:[%s251] sm:$0xf] %vm1288, %v1268
      %1290 = vst.msk [vmem:[%s251 + $0x4] sm:$0xf] %vm1288, %v1269
      %1291 = vst.msk [vmem:[%s251 + $0x8] sm:$0xf] %vm1288, %v1270
      %1292 = vst.msk [vmem:[%s251 + $0xc] sm:$0xf] %vm1288, %v1271
      %1293 = vst.msk [vmem:[%s251 + $0x10] sm:$0xf] %vm1288, %v1272
      %1294 = vst.msk [vmem:[%s251 + $0x14] sm:$0xf] %vm1288, %v1273
      %1295 = vst.msk [vmem:[%s251 + $0x18] sm:$0xf] %vm1288, %v1274
      %1296 = vst.msk [vmem:[%s251 + $0x1c] sm:$0xf] %vm1288, %v1275
      %1297 = vst.msk [vmem:[%s251 + $0x20] sm:$0xf] %vm1288, %v1276
      %1298 = vst.msk [vmem:[%s251 + $0x24] sm:$0xf] %vm1288, %v1277
      %p1299 = scmp.lt.s32.totalorder %s17, 1
      %s1300 = scalar_select %p1299, %s17, 1
      %s1301 = smul.addr %s1300, 10
      %s1302 = smul.addr %s1301, 4
      %s1303 = scalar_lea.vmem %s6, %s1302
      // Predicated region
      $region45: #{tpu_custom_call.1} parent=43 // pred_check
        %p1304 = pneg %p166
      $region46: #{tpu_custom_call.1} parent=43 // pred_check_branch
        %1306 = sbr.rel (%p1304) target = $region48
      $region47: #{tpu_custom_call.1} parent=43 // pred_region
        _
      $region48: #{tpu_custom_call.1} parent=43 // pred_fallthru
        _
    $region44: #{tpu_custom_call.1} parent=5 // pred_fallthru
      _
    %p1307 = scmp.le.s32.totalorder 2, %s12
    // Predicated region
    $region49: #{tpu_custom_call.1} parent=5 // pred_check
      %p1308 = pneg %p1307
    $region50: #{tpu_custom_call.1} parent=5 // pred_check_branch
      %1310 = sbr.rel (%p1308) target = $region52
    $region51: #{tpu_custom_call.1} parent=5 // pred_region
      %s1311 = ssub.s32 %s12, 2
      // Predicated region
      $region53: #{tpu_custom_call.1} parent=51 // pred_check
        %p1312 = pneg %p172
      $region54: #{tpu_custom_call.1} parent=51 // pred_check_branch
        %1314 = sbr.rel (%p1312) target = $region56
      $region55: #{tpu_custom_call.1} parent=51 // pred_region
        %p1315 = scmp.lt.s32.totalorder %s18, 1
        %s1316 = scalar_select %p1315, %s18, 1
        %s1317 = smul.addr %s1316, 10
        %s1318 = smul.addr %s1317, 4
        %s1319 = scalar_lea.vmem %s6, %s1318
      $region56: #{tpu_custom_call.1} parent=51 // pred_fallthru
        _
    $region52: #{tpu_custom_call.1} parent=5 // pred_fallthru
      _
  $region6: #{tpu_custom_call.1} parent=0 // loop_footer
    %s16 = sadd.s32 1, %s12
  $region7: #{tpu_custom_call.1} parent=0 // loop_footer_branch
    %11 = sbr.rel target = $region3
  $region8: #{tpu_custom_call.1} parent=0 // loop_exit
    _

</llo_original>
